<compile_context>
chip_gen: v7x
topology: tpu7x:2x2x1
jax: 0.10.0
libtpu: 0.0.40
codegen_flags: <defaults>
</compile_context>

<pallas_src>
import functools

import jax
import jax.numpy as jnp
from jax.experimental import pallas as pl
from jax.experimental.pallas import tpu as pltpu


def _patch_expand_kernel_onehot(x_ref, w_ref, e_ref, etm_ref, etg_ref, b_ref,
                                o_ref, *, eps):
    # x_ref:   (tl, dim)        input block (any float dtype; cast to bf16 here)
    # w_ref:   (dim, 2*dim)     bf16 expand weight
    # e_ref:   (2*dim, 128)     bf16 block-diagonal one-hot, pre-scaled by 1/c
    # etm_ref: (128, 2*dim)     bf16 one-hot transpose (mean broadcast)
    # etg_ref: (128, 2*dim)     bf16 one-hot transpose pre-scaled by gamma
    # b_ref:   (1, 2*dim)       f32 beta tiled over the 4 (p1,p2) groups
    # o_ref:   (tile_h, 2, W, dim)  bf16 output block
    tl, dim = x_ref.shape
    tile_h, _, W, _ = o_ref.shape

    x = x_ref[...].astype(jnp.bfloat16)          # in-kernel cast (no wrapper pass)
    y = jnp.dot(x, w_ref[...], preferred_element_type=jnp.float32)  # (tl, 2*dim) f32

    e = e_ref[...]
    etm = etm_ref[...]
    etg = etg_ref[...]

    # Two-pass moments; all stat matmuls are bf16 x bf16 with f32 accumulation.
    mean = jnp.dot(y.astype(jnp.bfloat16), e,
                   preferred_element_type=jnp.float32)               # (tl, 128)
    mean_b = jnp.dot(mean.astype(jnp.bfloat16), etm,
                     preferred_element_type=jnp.float32)             # (tl, 2*dim)
    d = y - mean_b
    var = jnp.dot((d * d).astype(jnp.bfloat16), e,
                  preferred_element_type=jnp.float32)                # (tl, 128)
    inv = jax.lax.rsqrt(var + eps)
    invg = jnp.dot(inv.astype(jnp.bfloat16), etg,
                   preferred_element_type=jnp.float32)               # (tl, 2*dim), gamma folded in
    yn = d * invg + b_ref[...]

    # Fused rearrange 'b h w (p1 p2 c) -> b (h p1) (w p2) c':
    # p1 selects the column half; (w, p2, c) is already contiguous as (W, dim).
    # NOTE: for dim not a multiple of 128 these are masked/partial lane stores.
    odt = o_ref.dtype
    o_ref[:, 0, :, :] = yn[:, :dim].reshape(tile_h, W, dim).astype(odt)
    o_ref[:, 1, :, :] = yn[:, dim:].reshape(tile_h, W, dim).astype(odt)


def _patch_expand_kernel_aligned(x_ref, w_ref, g_ref, b_ref, o_ref, *, eps):
    # dim//2 is a multiple of 128: the (tl, 4, c) group split is lane-aligned,
    # so use it directly (no one-hot constants are passed for this path).
    tl, dim = x_ref.shape
    c2 = 2 * dim
    c = dim // 2
    tile_h, _, W, _ = o_ref.shape

    x = x_ref[...].astype(jnp.bfloat16)
    y = jnp.dot(x, w_ref[...], preferred_element_type=jnp.float32)  # (tl, c2) f32

    y4 = y.reshape(tl, 4, c)
    mean = jnp.mean(y4, axis=-1, keepdims=True)
    d = y4 - mean
    var = jnp.mean(d * d, axis=-1, keepdims=True)
    yn = (d * jax.lax.rsqrt(var + eps)).reshape(tl, c2)
    yn = yn * g_ref[...] + b_ref[...]

    odt = o_ref.dtype
    o_ref[:, 0, :, :] = yn[:, :dim].reshape(tile_h, W, dim).astype(odt)
    o_ref[:, 1, :, :] = yn[:, dim:].reshape(tile_h, W, dim).astype(odt)


def _vmem_limit_bytes():
    """Generation-aware scoped-VMEM limit (v5e/v6e: 96 MiB, v7x: 48 MiB)."""
    try:
        cap = int(pltpu.get_tpu_info().vmem_capacity_bytes)
    except Exception:
        cap = 64 * 1024 * 1024
    return min((cap * 3) // 4, 96 * 1024 * 1024)


def _pick_tile_h(H, W, B, dim, in_bytes, vmem_limit):
    """Byte-based tile picker.

    Per-row VMEM footprint estimate (row = one token of width dim):
      2x double-buffered input block : 2 * dim * in_bytes
      2x double-buffered bf16 output : 2 * (2*dim) * 2   = 8 * dim
      ~3x f32 (tl, 2*dim) intermediates (y, d, yn)       = 24 * dim
    """
    per_row = dim * (2 * in_bytes + 8 + 24)
    budget = int(0.6 * vmem_limit)
    max_tl = max(W, budget // max(per_row, 1))

    # Target ~1 MiB of input block but at least ~256 rows (full MXU M), capped
    # by the VMEM budget.
    target_tl = max(256, (1 << 20) // max(dim * in_bytes, 1))
    target_tl = min(target_tl, max_tl)

    th = max(1, min(H, target_tl // max(W, 1)))
    while H % th != 0:
        th -= 1

    # Prefer bf16-packing-friendly row counts ((tile_h*W) % 16 == 0).
    while ((th * W) % 16 != 0 and 2 * th <= H and H % (2 * th) == 0
           and 2 * th * W <= max_tl):
        th *= 2

    # Megacore (v7x has 2 TCs): keep at least 2 grid steps, prefer an even count.
    def n_tiles(t):
        return (B * H) // t

    while th > 1 and n_tiles(th) < 2:
        t2 = th - 1
        while t2 > 1 and H % t2 != 0:
            t2 -= 1
        th = t2
    if 1 < n_tiles(th) < 8 and n_tiles(th) % 2 == 1 and th % 2 == 0 and H % (th // 2) == 0:
        th //= 2
    return th


def patch_expand(x, w_expand, gamma, beta, *, resolution, eps=1e-5,
                 tile_h=None, out_dtype=jnp.bfloat16):
    """Pallas implementation of PatchExpand.forward.

    x:        (B, L, dim)     with L == H*W (f32 or bf16; cast to bf16 in-kernel)
    w_expand: (dim, 2*dim)    (transpose of the PyTorch nn.Linear weight)
    gamma:    (dim//2,)       LayerNorm weight
    beta:     (dim//2,)       LayerNorm bias
    returns:  (B, 4*L, dim//2)
    """
    H, W = resolution
    B, L, dim = x.shape
    assert L == H * W, (L, H, W)
    assert dim % 2 == 0
    c2 = 2 * dim
    c = dim // 2

    vmem_limit = _vmem_limit_bytes()
    in_bytes = x.dtype.itemsize
    if tile_h is None:
        tile_h = _pick_tile_h(H, W, B, dim, in_bytes, vmem_limit)
    assert H % tile_h == 0, (H, tile_h)
    tl = tile_h * W
    assert tl % 8 == 0 or tl == B * L, (
        "input block rows (tile_h*W) must be a multiple of 8 sublanes")

    # No wrapper-side cast of x (would be a separate HBM read+write pass); the
    # kernel casts each block to bf16 right before the MXU matmul.
    x2 = x.reshape(B * L, dim)
    w2 = w_expand.astype(jnp.bfloat16)

    # LayerNorm affine params tiled over the 4 (p1, p2) groups -> lane-dense (1, 2*dim).
    gamma_full = jnp.tile(gamma.astype(jnp.float32), 4)              # (c2,)
    beta_full = jnp.tile(beta.astype(jnp.float32), 4).reshape(1, c2)

    lane_aligned = (c % 128 == 0)
    n_tiles = (B * H) // tile_h

    common_in_specs = [
        pl.BlockSpec((tl, dim), lambda i: (i, 0)),
        pl.BlockSpec((dim, c2), lambda i: (0, 0)),
    ]

    if lane_aligned:
        kernel = functools.partial(_patch_expand_kernel_aligned, eps=eps)
        inputs = (x2, w2, gamma_full.reshape(1, c2), beta_full)
        in_specs = common_in_specs + [
            pl.BlockSpec((1, c2), lambda i: (0, 0)),
            pl.BlockSpec((1, c2), lambda i: (0, 0)),
        ]
    else:
        # Block-diagonal one-hot matrices for per-group statistics, built in
        # bf16 (one-hot values exact; 1/c and gamma folded in on the host).
        grp = jnp.arange(c2, dtype=jnp.int32) // c                   # group id per channel
        col = jnp.arange(128, dtype=jnp.int32)
        onehot = (grp[:, None] == col[None, :])                      # (c2, 128) bool
        E = (onehot.astype(jnp.float32) / float(c)).astype(jnp.bfloat16)        # (c2, 128)
        ETm = onehot.T.astype(jnp.bfloat16)                                     # (128, c2)
        ETg = (onehot.T.astype(jnp.float32) * gamma_full[None, :]).astype(jnp.bfloat16)
        kernel = functools.partial(_patch_expand_kernel_onehot, eps=eps)
        inputs = (x2, w2, E, ETm, ETg, beta_full)
        in_specs = common_in_specs + [
            pl.BlockSpec((c2, 128), lambda i: (0, 0)),
            pl.BlockSpec((128, c2), lambda i: (0, 0)),
            pl.BlockSpec((128, c2), lambda i: (0, 0)),
            pl.BlockSpec((1, c2), lambda i: (0, 0)),
        ]

    y = pl.pallas_call(
        kernel,
        out_shape=jax.ShapeDtypeStruct((B * H, 2, W, dim), out_dtype),
        grid_spec=pltpu.PrefetchScalarGridSpec(
            num_scalar_prefetch=0,
            grid=(n_tiles,),
            in_specs=in_specs,
            out_specs=pl.BlockSpec((tile_h, 2, W, dim), lambda i: (i, 0, 0, 0)),
        ),
        compiler_params=pltpu.CompilerParams(
            dimension_semantics=("parallel",),
            vmem_limit_bytes=vmem_limit,
        ),
    )(*inputs)

    # (B*H, 2, W, dim) is already in (b, h, p1, w, p2, c) channel-major order,
    # so this reshape to (B, 4L, c) is a free metadata reshape (no HBM pass).
    return y.reshape(B, 4 * L, c)


def _reference(x, w_expand, gamma, beta, resolution, eps=1e-5):
    H, W = resolution
    B, L, dim = x.shape
    c = dim // 2
    y = jnp.einsum("blk,kc->blc", x.astype(jnp.float32), w_expand.astype(jnp.float32))
    y = y.reshape(B, H, W, 2, 2, c)
    y = jnp.transpose(y, (0, 1, 3, 2, 4, 5)).reshape(B, 4 * L, c)
    mean = jnp.mean(y, axis=-1, keepdims=True)
    var = jnp.mean((y - mean) ** 2, axis=-1, keepdims=True)
    return ((y - mean) * jax.lax.rsqrt(var + eps) * gamma.astype(jnp.float32)
            + beta.astype(jnp.float32))


if __name__ == "__main__":
    key = jax.random.PRNGKey(0)

    def run_case(B, H, W, dim, kseed):
        L = H * W
        kx, kw, kg, kb = jax.random.split(jax.random.fold_in(key, kseed), 4)
        x = jax.random.normal(kx, (B, L, dim), dtype=jnp.float32)
        # nn.Linear(dim, 2*dim, bias=False): PyTorch weight is (2*dim, dim); store transposed.
        w_expand = jax.random.normal(kw, (dim, 2 * dim), dtype=jnp.float32) * 0.05
        gamma = 1.0 + 0.1 * jax.random.normal(kg, (dim // 2,), dtype=jnp.float32)
        beta = 0.1 * jax.random.normal(kb, (dim // 2,), dtype=jnp.float32)

        x_bf = x.astype(jnp.bfloat16)
        w_bf = w_expand.astype(jnp.bfloat16)

        out = patch_expand(x_bf, w_bf, gamma, beta, resolution=(H, W))
        out = jax.block_until_ready(out)
        assert out.shape == (B, 4 * L, dim // 2), out.shape

        ref = _reference(x_bf, w_bf, gamma, beta, (H, W))
        err = float(jnp.max(jnp.abs(out.astype(jnp.float32) - ref)))
        assert jnp.allclose(out.astype(jnp.float32), ref, atol=8e-2, rtol=8e-2), err

    # Small-dim PatchExpand (dim//2 < 128): one-hot statistics path.
    run_case(B=2, H=8, W=8, dim=32, kseed=0)
    # A FAUnet-like dim (96) exercising the megacore-friendly tile adjustment.
    run_case(B=1, H=4, W=8, dim=96, kseed=1)

    print("KERNEL_OK")
</pallas_src>

<mosaic_0001>
module attributes {stable_mosaic.version = 11 : i64} {
  func.func @_patch_expand_kernel_onehot(%arg0: i32, %arg1: memref<64x32xbf16, #tpu.memory_space<vmem>>, %arg2: memref<32x64xbf16, #tpu.memory_space<vmem>>, %arg3: memref<64x128xbf16, #tpu.memory_space<vmem>>, %arg4: memref<128x64xbf16, #tpu.memory_space<vmem>>, %arg5: memref<128x64xbf16, #tpu.memory_space<vmem>>, %arg6: memref<1x64xf32, #tpu.memory_space<vmem>>, %arg7: memref<8x2x8x32xbf16, #tpu.memory_space<vmem>>) attributes {dimension_semantics = [#tpu.dimension_semantics<parallel>], iteration_bounds = array<i64: 2>, scalar_prefetch = 0 : i64, scratch_operands = 0 : i64, tpu.core_type = #tpu.core_type<tc>, window_params = [{transform_indices = @transform_0, window_bounds = array<i64: 64, 32>}, {pipeline_mode = #tpu.pipeline_mode<synchronous>, transform_indices = @transform_1, window_bounds = array<i64: 32, 64>}, {pipeline_mode = #tpu.pipeline_mode<synchronous>, transform_indices = @transform_2, window_bounds = array<i64: 64, 128>}, {pipeline_mode = #tpu.pipeline_mode<synchronous>, transform_indices = @transform_3, window_bounds = array<i64: 128, 64>}, {pipeline_mode = #tpu.pipeline_mode<synchronous>, transform_indices = @transform_4, window_bounds = array<i64: 128, 64>}, {pipeline_mode = #tpu.pipeline_mode<synchronous>, transform_indices = @transform_5, window_bounds = array<i64: 1, 64>}, {transform_indices = @transform_6, window_bounds = array<i64: 8, 2, 8, 32>}]} {
    %c0 = arith.constant 0 : index
    %c0_0 = arith.constant 0 : index
    %0 = vector.load %arg1[%c0, %c0_0] : memref<64x32xbf16, #tpu.memory_space<vmem>>, vector<64x32xbf16>
    %c0_1 = arith.constant 0 : index
    %c0_2 = arith.constant 0 : index
    %1 = vector.load %arg2[%c0_1, %c0_2] : memref<32x64xbf16, #tpu.memory_space<vmem>>, vector<32x64xbf16>
    %cst = arith.constant dense<0.000000e+00> : vector<64x64xf32>
    %2 = tpu.matmul %0, %1, %cst {dimension_numbers = #tpu.dot_dimension_numbers<[1], [0], [0], [1], [0, 0, 1, 1], [], []>} : vector<64x32xbf16>, vector<32x64xbf16>, vector<64x64xf32> -> vector<64x64xf32>
    %c0_3 = arith.constant 0 : index
    %c0_4 = arith.constant 0 : index
    %3 = vector.load %arg3[%c0_3, %c0_4] : memref<64x128xbf16, #tpu.memory_space<vmem>>, vector<64x128xbf16>
    %c0_5 = arith.constant 0 : index
    %c0_6 = arith.constant 0 : index
    %4 = vector.load %arg4[%c0_5, %c0_6] : memref<128x64xbf16, #tpu.memory_space<vmem>>, vector<128x64xbf16>
    %c0_7 = arith.constant 0 : index
    %c0_8 = arith.constant 0 : index
    %5 = vector.load %arg5[%c0_7, %c0_8] : memref<128x64xbf16, #tpu.memory_space<vmem>>, vector<128x64xbf16>
    %6 = arith.truncf %2 : vector<64x64xf32> to vector<64x64xbf16>
    %cst_9 = arith.constant dense<0.000000e+00> : vector<64x128xf32>
    %7 = tpu.matmul %6, %3, %cst_9 {dimension_numbers = #tpu.dot_dimension_numbers<[1], [0], [0], [1], [0, 0, 1, 1], [], []>} : vector<64x64xbf16>, vector<64x128xbf16>, vector<64x128xf32> -> vector<64x128xf32>
    %8 = arith.truncf %7 : vector<64x128xf32> to vector<64x128xbf16>
    %cst_10 = arith.constant dense<0.000000e+00> : vector<64x64xf32>
    %9 = tpu.matmul %8, %4, %cst_10 {dimension_numbers = #tpu.dot_dimension_numbers<[1], [0], [0], [1], [0, 0, 1, 1], [], []>} : vector<64x128xbf16>, vector<128x64xbf16>, vector<64x64xf32> -> vector<64x64xf32>
    %10 = arith.subf %2, %9 : vector<64x64xf32>
    %11 = arith.mulf %10, %10 : vector<64x64xf32>
    %12 = arith.truncf %11 : vector<64x64xf32> to vector<64x64xbf16>
    %cst_11 = arith.constant dense<0.000000e+00> : vector<64x128xf32>
    %13 = tpu.matmul %12, %3, %cst_11 {dimension_numbers = #tpu.dot_dimension_numbers<[1], [0], [0], [1], [0, 0, 1, 1], [], []>} : vector<64x64xbf16>, vector<64x128xbf16>, vector<64x128xf32> -> vector<64x128xf32>
    %cst_12 = arith.constant 9.99999974E-6 : f32
    %14 = vector.broadcast %cst_12 : f32 to vector<64x128xf32>
    %15 = arith.addf %13, %14 : vector<64x128xf32>
    %16 = math.rsqrt %15 : vector<64x128xf32>
    %17 = arith.truncf %16 : vector<64x128xf32> to vector<64x128xbf16>
    %cst_13 = arith.constant dense<0.000000e+00> : vector<64x64xf32>
    %18 = tpu.matmul %17, %5, %cst_13 {dimension_numbers = #tpu.dot_dimension_numbers<[1], [0], [0], [1], [0, 0, 1, 1], [], []>} : vector<64x128xbf16>, vector<128x64xbf16>, vector<64x64xf32> -> vector<64x64xf32>
    %19 = arith.mulf %10, %18 : vector<64x64xf32>
    %c0_14 = arith.constant 0 : index
    %c0_15 = arith.constant 0 : index
    %20 = vector.load %arg6[%c0_14, %c0_15] : memref<1x64xf32, #tpu.memory_space<vmem>>, vector<1x64xf32>
    %21 = vector.broadcast %20 : vector<1x64xf32> to vector<64x64xf32>
    %22 = arith.addf %19, %21 : vector<64x64xf32>
    %23 = vector.extract_strided_slice %22 {offsets = [0, 0], sizes = [64, 32], strides = [1, 1]} : vector<64x64xf32> to vector<64x32xf32>
    %24 = vector.shape_cast %23 : vector<64x32xf32> to vector<8x8x32xf32>
    %25 = arith.truncf %24 : vector<8x8x32xf32> to vector<8x8x32xbf16>
    %c0_16 = arith.constant 0 : index
    %c0_17 = arith.constant 0 : index
    %c0_18 = arith.constant 0 : index
    %c0_19 = arith.constant 0 : index
    %26 = vector.load %arg7[%c0_16, %c0_17, %c0_18, %c0_19] : memref<8x2x8x32xbf16, #tpu.memory_space<vmem>>, vector<8x1x8x32xbf16>
    %27 = vector.shape_cast %26 : vector<8x1x8x32xbf16> to vector<8x8x32xbf16>
    %28 = vector.shape_cast %25 : vector<8x8x32xbf16> to vector<8x1x8x32xbf16>
    tpu.vector_store %arg7[%c0_16, %c0_17, %c0_18, %c0_19], %28 {strides = array<i32>} : memref<8x2x8x32xbf16, #tpu.memory_space<vmem>>, vector<8x1x8x32xbf16>,
    %29 = vector.extract_strided_slice %22 {offsets = [0, 32], sizes = [64, 32], strides = [1, 1]} : vector<64x64xf32> to vector<64x32xf32>
    %30 = vector.shape_cast %29 : vector<64x32xf32> to vector<8x8x32xf32>
    %31 = arith.truncf %30 : vector<8x8x32xf32> to vector<8x8x32xbf16>
    %c0_20 = arith.constant 0 : index
    %c1 = arith.constant 1 : index
    %c0_21 = arith.constant 0 : index
    %c0_22 = arith.constant 0 : index
    %32 = vector.load %arg7[%c0_20, %c1, %c0_21, %c0_22] : memref<8x2x8x32xbf16, #tpu.memory_space<vmem>>, vector<8x1x8x32xbf16>
    %33 = vector.shape_cast %32 : vector<8x1x8x32xbf16> to vector<8x8x32xbf16>
    %34 = vector.shape_cast %31 : vector<8x8x32xbf16> to vector<8x1x8x32xbf16>
    tpu.vector_store %arg7[%c0_20, %c1, %c0_21, %c0_22], %34 {strides = array<i32>} : memref<8x2x8x32xbf16, #tpu.memory_space<vmem>>, vector<8x1x8x32xbf16>,
    return
  }
  func.func @transform_0(%arg0: i32) -> (i32, i32) {
    %c0_i32 = arith.constant 0 : i32
    %c0_i32_0 = arith.constant 0 : i32
    return %arg0, %c0_i32 : i32, i32
  }
  func.func @transform_1(%arg0: i32) -> (i32, i32) {
    %c0_i32 = arith.constant 0 : i32
    %c0_i32_0 = arith.constant 0 : i32
    %c0_i32_1 = arith.constant 0 : i32
    return %c0_i32, %c0_i32_0 : i32, i32
  }
  func.func @transform_2(%arg0: i32) -> (i32, i32) {
    %c0_i32 = arith.constant 0 : i32
    %c0_i32_0 = arith.constant 0 : i32
    %c0_i32_1 = arith.constant 0 : i32
    return %c0_i32, %c0_i32_0 : i32, i32
  }
  func.func @transform_3(%arg0: i32) -> (i32, i32) {
    %c0_i32 = arith.constant 0 : i32
    %c0_i32_0 = arith.constant 0 : i32
    %c0_i32_1 = arith.constant 0 : i32
    return %c0_i32, %c0_i32_0 : i32, i32
  }
  func.func @transform_4(%arg0: i32) -> (i32, i32) {
    %c0_i32 = arith.constant 0 : i32
    %c0_i32_0 = arith.constant 0 : i32
    %c0_i32_1 = arith.constant 0 : i32
    return %c0_i32, %c0_i32_0 : i32, i32
  }
  func.func @transform_5(%arg0: i32) -> (i32, i32) {
    %c0_i32 = arith.constant 0 : i32
    %c0_i32_0 = arith.constant 0 : i32
    %c0_i32_1 = arith.constant 0 : i32
    return %c0_i32, %c0_i32_0 : i32, i32
  }
  func.func @transform_6(%arg0: i32) -> (i32, i32, i32, i32) {
    %c0_i32 = arith.constant 0 : i32
    %c0_i32_0 = arith.constant 0 : i32
    %c0_i32_1 = arith.constant 0 : i32
    %c0_i32_2 = arith.constant 0 : i32
    return %arg0, %c0_i32, %c0_i32_0, %c0_i32_1 : i32, i32, i32, i32
  }
}

</mosaic_0001>

<llo_original>
// kernel: tpu_custom_call.1
$region0: #{tpu_custom_call.1}
  #allocation0 [shape = 'u32[]', space=smem, size = 0x4, offset = 0x4, fixed_abs, tag = 'smem constant byte address 0x4 - core index']
  #allocation1 [shape = 'u32[144,128]{1,0:T(1,128)}', space=vmem, size = 0x12000, scoped, tag = 'internal scratch']
  %s0 = inlined_call_operand.vmem [shape: bf16[128,32], index: 0, kind: input, shape index: {}]
  %s1 = inlined_call_operand.vmem [shape: bf16[32,64], index: 1, kind: input, shape index: {}]
  %s2 = inlined_call_operand.vmem [shape: bf16[64,128], index: 2, kind: input, shape index: {}]
  %s3 = inlined_call_operand.vmem [shape: bf16[128,64], index: 3, kind: input, shape index: {}]
  %s4 = inlined_call_operand.vmem [shape: bf16[128,64], index: 4, kind: input, shape index: {}]
  %s5 = inlined_call_operand.vmem [shape: f32[1,64], index: 5, kind: input, shape index: {}]
  %s6 = inlined_call_operand.hbm [shape: bf16[16,2,8,32], index: 6, kind: output, shape index: {}]
  %s7 = sld [smem:[#allocation0]]
  $region57: #{tpu_custom_call.1} parent=0
    _
  %s9 = ssub.s32 1, %s7
  %s10 = scalar_select 0, %s9, %s7
  $region1: #{tpu_custom_call.1} parent=0
    #allocation2 [shape = 'u8[65536]{0}', space=vmem, size = 0x10000, scoped, tag = 'output window, operand 0']
    #allocation3 [shape = 's32[2]{0}', space=sflag, size = 0x8, scoped, tag = 'scoped memory for tpu_custom_call.1']
    %11 = vsyncpa [#allocation3], 0
    %s12 = scalar_lea.sflag [#allocation3], 1
    %13 = vsyncpa %s12, 0
    loop: start=0, step=1, limit=4
    $region2: #{tpu_custom_call.1} parent=1 // loop_pre_header
      _
    $region3: #{tpu_custom_call.1} parent=1 // loop_header
      %s15 = sphi 0, %s19
      %p16 = scmp.ge.s32.totalorder %s15, 4
      %s25 = sphi 0, %s27
      %s28 = sphi 0, %s25
      %s29 = sphi 0, %s28
      %s45 = sphi 0, %s29
      %s49 = sphi 0, %s49
      %s51 = sphi 0, %s49
      %s52 = sphi 0, %s51
      %s66 = sphi 0, %s52
      %s70 = sphi 0, %s70
      %s72 = sphi 0, %s70
      %s73 = sphi 0, %s72
      %s87 = sphi 0, %s73
      %s91 = sphi 0, %s91
      %s93 = sphi 0, %s91
      %s94 = sphi 0, %s93
      %s108 = sphi 0, %s94
      %s112 = sphi 0, %s112
      %s114 = sphi 0, %s112
      %s115 = sphi 0, %s114
      %s129 = sphi 0, %s115
      %s133 = sphi 0, %s133
      %s135 = sphi 0, %s133
      %s136 = sphi 0, %s135
      %s150 = sphi 0, %s136
      %s156 = sphi 0, %s158
      %s159 = sphi 0, %s156
      %s160 = sphi 0, %s159
      %s176 = sphi 0, %s160
    $region4: #{tpu_custom_call.1} parent=1 // loop_header_branch
      %18 = sbr.rel (%p16) target = $region8
    $region5: #{tpu_custom_call.1} parent=1 // loop_body
      %s20 = ssub.s32 %s15, 1
      %s21 = ssub.s32 %s15, 2
      %s22 = sadd.s32 %s15, 1
      %s23 = ssub.s32 %s15, %s22
      %p24 = scmp.eq.s32.totalorder %s23, 0
      %s26 = sadd.s32 %s25, 1
      %s27 = scalar_select %p24, %s25, %s26
      %p30 = pneg %p24
      %p31 = scmp.eq.s32.totalorder %s15, 1
      %p32 = por %p30, %p31
      %p33 = scmp.ne.s32.totalorder %s25, %s28
      %p34 = scmp.eq.s32.totalorder %s15, 0
      %p35 = por %p33, %p34
      %p36 = scmp.ne.s32.totalorder %s25, %s28
      %p37 = scmp.eq.s32.totalorder %s20, 1
      %p38 = por %p36, %p37
      %p39 = scmp.ne.s32.totalorder %s28, %s29
      %p40 = scmp.eq.s32.totalorder %s20, 0
      %p41 = por %p39, %p40
      %p42 = scmp.ne.s32.totalorder %s28, %s29
      %p43 = scmp.eq.s32.totalorder %s21, 1
      %p44 = por %p42, %p43
      %p46 = scmp.ne.s32.totalorder %s29, %s45
      %p47 = scmp.eq.s32.totalorder %s21, 0
      %p48 = por %p46, %p47
      %s50 = sadd.s32 %s49, 1
      %p53 = scmp.eq.s32.totalorder %s15, 1
      %p54 = scmp.ne.s32.totalorder %s49, %s51
      %p55 = scmp.eq.s32.totalorder %s15, 0
      %p56 = por %p54, %p55
      %p57 = scmp.ne.s32.totalorder %s49, %s51
      %p58 = scmp.eq.s32.totalorder %s20, 1
      %p59 = por %p57, %p58
      %p60 = scmp.ne.s32.totalorder %s51, %s52
      %p61 = scmp.eq.s32.totalorder %s20, 0
      %p62 = por %p60, %p61
      %p63 = scmp.ne.s32.totalorder %s51, %s52
      %p64 = scmp.eq.s32.totalorder %s21, 1
      %p65 = por %p63, %p64
      %p67 = scmp.ne.s32.totalorder %s52, %s66
      %p68 = scmp.eq.s32.totalorder %s21, 0
      %p69 = por %p67, %p68
      %s71 = sadd.s32 %s70, 1
      %p74 = scmp.eq.s32.totalorder %s15, 1
      %p75 = scmp.ne.s32.totalorder %s70, %s72
      %p76 = scmp.eq.s32.totalorder %s15, 0
      %p77 = por %p75, %p76
      %p78 = scmp.ne.s32.totalorder %s70, %s72
      %p79 = scmp.eq.s32.totalorder %s20, 1
      %p80 = por %p78, %p79
      %p81 = scmp.ne.s32.totalorder %s72, %s73
      %p82 = scmp.eq.s32.totalorder %s20, 0
      %p83 = por %p81, %p82
      %p84 = scmp.ne.s32.totalorder %s72, %s73
      %p85 = scmp.eq.s32.totalorder %s21, 1
      %p86 = por %p84, %p85
      %p88 = scmp.ne.s32.totalorder %s73, %s87
      %p89 = scmp.eq.s32.totalorder %s21, 0
      %p90 = por %p88, %p89
      %s92 = sadd.s32 %s91, 1
      %p95 = scmp.eq.s32.totalorder %s15, 1
      %p96 = scmp.ne.s32.totalorder %s91, %s93
      %p97 = scmp.eq.s32.totalorder %s15, 0
      %p98 = por %p96, %p97
      %p99 = scmp.ne.s32.totalorder %s91, %s93
      %p100 = scmp.eq.s32.totalorder %s20, 1
      %p101 = por %p99, %p100
      %p102 = scmp.ne.s32.totalorder %s93, %s94
      %p103 = scmp.eq.s32.totalorder %s20, 0
      %p104 = por %p102, %p103
      %p105 = scmp.ne.s32.totalorder %s93, %s94
      %p106 = scmp.eq.s32.totalorder %s21, 1
      %p107 = por %p105, %p106
      %p109 = scmp.ne.s32.totalorder %s94, %s108
      %p110 = scmp.eq.s32.totalorder %s21, 0
      %p111 = por %p109, %p110
      %s113 = sadd.s32 %s112, 1
      %p116 = scmp.eq.s32.totalorder %s15, 1
      %p117 = scmp.ne.s32.totalorder %s112, %s114
      %p118 = scmp.eq.s32.totalorder %s15, 0
      %p119 = por %p117, %p118
      %p120 = scmp.ne.s32.totalorder %s112, %s114
      %p121 = scmp.eq.s32.totalorder %s20, 1
      %p122 = por %p120, %p121
      %p123 = scmp.ne.s32.totalorder %s114, %s115
      %p124 = scmp.eq.s32.totalorder %s20, 0
      %p125 = por %p123, %p124
      %p126 = scmp.ne.s32.totalorder %s114, %s115
      %p127 = scmp.eq.s32.totalorder %s21, 1
      %p128 = por %p126, %p127
      %p130 = scmp.ne.s32.totalorder %s115, %s129
      %p131 = scmp.eq.s32.totalorder %s21, 0
      %p132 = por %p130, %p131
      %s134 = sadd.s32 %s133, 1
      %p137 = scmp.eq.s32.totalorder %s15, 1
      %p138 = scmp.ne.s32.totalorder %s133, %s135
      %p139 = scmp.eq.s32.totalorder %s15, 0
      %p140 = por %p138, %p139
      %p141 = scmp.ne.s32.totalorder %s133, %s135
      %p142 = scmp.eq.s32.totalorder %s20, 1
      %p143 = por %p141, %p142
      %p144 = scmp.ne.s32.totalorder %s135, %s136
      %p145 = scmp.eq.s32.totalorder %s20, 0
      %p146 = por %p144, %p145
      %p147 = scmp.ne.s32.totalorder %s135, %s136
      %p148 = scmp.eq.s32.totalorder %s21, 1
      %p149 = por %p147, %p148
      %p151 = scmp.ne.s32.totalorder %s136, %s150
      %p152 = scmp.eq.s32.totalorder %s21, 0
      %p153 = por %p151, %p152
      %s154 = ssub.s32 %s15, %s22
      %p155 = scmp.eq.s32.totalorder %s154, 0
      %s157 = sadd.s32 %s156, 1
      %s158 = scalar_select %p155, %s156, %s157
      %p161 = pneg %p155
      %p162 = scmp.eq.s32.totalorder %s15, 1
      %p163 = por %p161, %p162
      %p164 = scmp.ne.s32.totalorder %s156, %s159
      %p165 = scmp.eq.s32.totalorder %s15, 0
      %p166 = por %p164, %p165
      %p167 = scmp.ne.s32.totalorder %s156, %s159
      %p168 = scmp.eq.s32.totalorder %s20, 1
      %p169 = por %p167, %p168
      %p170 = scmp.ne.s32.totalorder %s159, %s160
      %p171 = scmp.eq.s32.totalorder %s20, 0
      %p172 = por %p170, %p171
      %p173 = scmp.ne.s32.totalorder %s159, %s160
      %p174 = scmp.eq.s32.totalorder %s21, 1
      %p175 = por %p173, %p174
      %p177 = scmp.ne.s32.totalorder %s160, %s176
      %p178 = scmp.eq.s32.totalorder %s21, 0
      %p179 = por %p177, %p178
      %p180 = scmp.le.s32.totalorder 1, %s15
      %p181 = scmp.lt.s32.totalorder %s15, 3
      %p182 = pnand %p180, %p181
      %p183 = pneg %p182
      // Predicated region
      $region9: #{tpu_custom_call.1} parent=5 // pred_check
        _
      $region10: #{tpu_custom_call.1} parent=5 // pred_check_branch
        %185 = sbr.rel (%p182) target = $region12
      $region11: #{tpu_custom_call.1} parent=5 // pred_region
        %s186 = ssub.s32 %s15, 1
        // Predicated region
        $region13: #{tpu_custom_call.1} parent=11 // pred_check
          %p187 = pneg %p62
        $region14: #{tpu_custom_call.1} parent=11 // pred_check_branch
          %189 = sbr.rel (%p187) target = $region16
        $region15: #{tpu_custom_call.1} parent=11 // pred_region
          _
        $region16: #{tpu_custom_call.1} parent=11 // pred_fallthru
          _
        // Predicated region
        $region17: #{tpu_custom_call.1} parent=11 // pred_check
          %p190 = pneg %p83
        $region18: #{tpu_custom_call.1} parent=11 // pred_check_branch
          %192 = sbr.rel (%p190) target = $region20
        $region19: #{tpu_custom_call.1} parent=11 // pred_region
          _
        $region20: #{tpu_custom_call.1} parent=11 // pred_fallthru
          _
        // Predicated region
        $region21: #{tpu_custom_call.1} parent=11 // pred_check
          %p193 = pneg %p104
        $region22: #{tpu_custom_call.1} parent=11 // pred_check_branch
          %195 = sbr.rel (%p193) target = $region24
        $region23: #{tpu_custom_call.1} parent=11 // pred_region
          _
        $region24: #{tpu_custom_call.1} parent=11 // pred_fallthru
          _
        // Predicated region
        $region25: #{tpu_custom_call.1} parent=11 // pred_check
          %p196 = pneg %p125
        $region26: #{tpu_custom_call.1} parent=11 // pred_check_branch
          %198 = sbr.rel (%p196) target = $region28
        $region27: #{tpu_custom_call.1} parent=11 // pred_region
          _
        $region28: #{tpu_custom_call.1} parent=11 // pred_fallthru
          _
        // Predicated region
        $region29: #{tpu_custom_call.1} parent=11 // pred_check
          %p199 = pneg %p146
        $region30: #{tpu_custom_call.1} parent=11 // pred_check_branch
          %201 = sbr.rel (%p199) target = $region32
        $region31: #{tpu_custom_call.1} parent=11 // pred_region
          _
        $region32: #{tpu_custom_call.1} parent=11 // pred_fallthru
          _
      $region12: #{tpu_custom_call.1} parent=5 // pred_fallthru
        _
      %p202 = scmp.lt.s32.totalorder %s15, 2
      // Predicated region
      $region33: #{tpu_custom_call.1} parent=5 // pred_check
        %p203 = pneg %p202
      $region34: #{tpu_custom_call.1} parent=5 // pred_check_branch
        %205 = sbr.rel (%p203) target = $region36
      $region35: #{tpu_custom_call.1} parent=5 // pred_region
        // Predicated region
        $region37: #{tpu_custom_call.1} parent=35 // pred_check
          %p206 = pneg %p35
        $region38: #{tpu_custom_call.1} parent=35 // pred_check_branch
          %208 = sbr.rel (%p206) target = $region40
        $region39: #{tpu_custom_call.1} parent=35 // pred_region
          %s209 = smul.u32 8, %s15
          %p210 = scmp.lt.s32.totalorder %s209, 15
          %s211 = scalar_select %p210, %s209, 15
          %s212 = smul.addr %s211, 4
          %s213 = scalar_lea.vmem %s0, %s212
          %s214 = smul.u32 8, %s15
        $region40: #{tpu_custom_call.1} parent=35 // pred_fallthru
          _
      $region36: #{tpu_custom_call.1} parent=5 // pred_fallthru
        _
      %p215 = scmp.le.s32.totalorder 1, %s15
      %p216 = scmp.lt.s32.totalorder %s15, 3
      %p217 = pnand %p215, %p216
      %p218 = pneg %p217
      // Predicated region
      $region41: #{tpu_custom_call.1} parent=5 // pred_check
        _
      $region42: #{tpu_custom_call.1} parent=5 // pred_check_branch
        %220 = sbr.rel (%p217) target = $region44
      $region43: #{tpu_custom_call.1} parent=5 // pred_region
        %s221 = ssub.s32 %s15, 1
        %s222 = smul.u32 8, %s20
        %p223 = scmp.lt.s32.totalorder %s222, 15
        %s224 = scalar_select %p223, %s222, 15
        %s225 = smul.addr %s224, 4
        %s226 = scalar_lea.vmem %s0, %s225
        %p227 = pneg %p41
        %p228 = pneg %p38
        %p229 = pneg %p62
        %p230 = pneg %p59
        %p231 = pneg %p83
        %p232 = pneg %p80
        %p233 = pneg %p104
        %p234 = pneg %p101
        %p235 = pneg %p125
        %p236 = pneg %p122
        %p237 = pneg %p146
        %p238 = pneg %p143
        %p239 = pneg %p172
        %p240 = pneg %p169
        %s241 = sand.u32 %s159, 1
        %s242 = scalar_lea.sflag [#allocation3], %s241
        %s243 = sand.u32 %s159, 1
        %s244 = smul.addr %s243, 64
        %s245 = scalar_lea.vmem [#allocation2], %s244
        %s246 = smul.u32 8, %s20
        %p247 = scmp.lt.s32.totalorder %s246, 15
        %s248 = scalar_select %p247, %s246, 15
        %s249 = smul.addr %s248, 4
        %s250 = scalar_lea.vmem %s0, %s249
        %s251 = smul.u32 8, %s20
        %s252 = smul.u32 8, %s20
        %v254 = vld [vmem:[%s250] sm:$0xf]
        %v255 = vld [vmem:[%s250 + $0x4] sm:$0xf]
        %v256 = vld [vmem:[%s250 + $0x8] sm:$0xf]
        %v257 = vld [vmem:[%s250 + $0xc] sm:$0xf]
        %v258 = vld [vmem:[%s250 + $0x10] sm:$0xf]
        %v259 = vld [vmem:[%s250 + $0x14] sm:$0xf]
        %v260 = vld [vmem:[%s250 + $0x18] sm:$0xf]
        %v261 = vld [vmem:[%s250 + $0x1c] sm:$0xf]
        %v262 = vld [vmem:[%s1] sm:$0xf]
        %v263 = vld [vmem:[%s1 + $0x4] sm:$0xf]
        %v264 = vld [vmem:[%s1 + $0x8] sm:$0xf]
        %v265 = vld [vmem:[%s1 + $0xc] sm:$0xf]
        %v274 = vunpack.c.l.b16 %v254
        %v275 = vunpack.c.l.b16 %v255
        %v276 = vunpack.c.l.b16 %v256
        %v277 = vunpack.c.l.b16 %v257
        %v278 = vunpack.c.l.b16 %v258
        %v279 = vunpack.c.l.b16 %v259
        %v280 = vunpack.c.l.b16 %v260
        %v281 = vunpack.c.l.b16 %v261
        %v282 = vpack.c.b16 %v275, %v274
        %v283 = vpack.c.b16 %v277, %v276
        %v284 = vpack.c.b16 %v279, %v278
        %v285 = vpack.c.b16 %v281, %v280
        %v290 = vunpack.c.l.b16 %v262
        %v291 = vunpack.c.l.b16 %v263
        %v292 = vunpack.c.l.b16 %v264
        %v293 = vunpack.c.l.b16 %v265
        %v294 = vpack.c.b16 %v291, %v290
        %v295 = vpack.c.b16 %v293, %v292
        %vm298 = vcmask 261120
        %v300 = vsel %vm298, %v282, 0
        %v303 = vsel %vm298, %v283, 0
        %v306 = vsel %vm298, %v284, 0
        %v309 = vsel %vm298, %v285, 0
        %311 = vmatprep.subr.bf16.mxu0 0
        %312 = vmatpush1.bf16.msra.mxu0 %v294
        %313 = vmatprep.subr.bf16.mxu0 0
        %314 = vmatpush1.bf16.msra.mxu0 %v295
        %315 = vmatprep.subr.bf16.mxu0 0
        %316 = vmatpush1.bf16.msra.mxu0 0
        %317 = vmatprep.subr.bf16.mxu0 0
        %318 = vmatpush1.bf16.msra.mxu0 0
        %319 = vmatprep.subr.bf16.mxu0 0
        %320 = vmatpush1.bf16.msra.mxu0 0
        %321 = vmatprep.subr.bf16.mxu0 0
        %322 = vmatpush1.bf16.msra.mxu0 0
        %323 = vmatprep.subr.bf16.mxu0 0
        %324 = vmatpush1.bf16.msra.mxu0 0
        %325 = vmatprep.subr.bf16.mxu0 0
        %326 = vmatpush1.bf16.msra.mxu0 0
        %327 = vmatprep.subr.bf16.mxu0 0
        %328 = vmatpush1.bf16.msra.mxu0 0
        %329 = vmatprep.subr.bf16.mxu0 0
        %330 = vmatpush1.bf16.msra.mxu0 0
        %331 = vmatprep.subr.bf16.mxu0 0
        %332 = vmatpush1.bf16.msra.mxu0 0
        %333 = vmatprep.subr.bf16.mxu0 0
        %334 = vmatpush1.bf16.msra.mxu0 0
        %335 = vmatprep.subr.bf16.mxu0 0
        %336 = vmatpush1.bf16.msra.mxu0 0
        %337 = vmatprep.subr.bf16.mxu0 0
        %338 = vmatpush1.bf16.msra.mxu0 0
        %339 = vmatprep.subr.bf16.mxu0 0
        %340 = vmatpush1.bf16.msra.mxu0 0
        %341 = vmatprep.subr.bf16.mxu0 0
        %342 = vmatpush1.bf16.msra.mxu0 0
        %343 = vmatprep.mubr.bf16.mxu0 0
        %344 = vmatmul.mubr.bf16.gmra.mrb[0].mxu0 %v300
        %v345 = vpop.f32.mrb[0].mxu0
        %v346 = vadd.f32 0.0, %v345
        %v347 = vpop.f32.mrb[0].mxu0
        %v348 = vpop.f32.mrb[0].mxu0
        %v349 = vadd.f32 0.0, %v348
        %v350 = vpop.f32.mrb[0].mxu0
        %351 = vmatprep.mubr.bf16.mxu0 0
        %352 = vmatmul.mubr.bf16.gmra.mrb[0].mxu0 %v303
        %v353 = vpop.f32.mrb[0].mxu0
        %v354 = vadd.f32 0.0, %v353
        %v355 = vpop.f32.mrb[0].mxu0
        %v356 = vpop.f32.mrb[0].mxu0
        %v357 = vadd.f32 0.0, %v356
        %v358 = vpop.f32.mrb[0].mxu0
        %359 = vmatprep.mubr.bf16.mxu0 0
        %360 = vmatmul.mubr.bf16.gmra.mrb[0].mxu0 %v306
        %v361 = vpop.f32.mrb[0].mxu0
        %v362 = vadd.f32 0.0, %v361
        %v363 = vpop.f32.mrb[0].mxu0
        %v364 = vpop.f32.mrb[0].mxu0
        %v365 = vadd.f32 0.0, %v364
        %v366 = vpop.f32.mrb[0].mxu0
        %367 = vmatprep.mubr.bf16.mxu0 0
        %368 = vmatmul.mubr.bf16.gmra.mrb[0].mxu0 %v309
        %v369 = vpop.f32.mrb[0].mxu0
        %v370 = vadd.f32 0.0, %v369
        %v371 = vpop.f32.mrb[0].mxu0
        %v372 = vpop.f32.mrb[0].mxu0
        %v373 = vadd.f32 0.0, %v372
        %v374 = vpop.f32.mrb[0].mxu0
        %375 = vdwg.mxu0
        %v376 = vld [vmem:[%s2] sm:$0xf]
        %v377 = vld [vmem:[%s2 + $0x4] sm:$0xf]
        %v378 = vld [vmem:[%s2 + $0x8] sm:$0xf]
        %v379 = vld [vmem:[%s2 + $0xc] sm:$0xf]
        %v380 = vld [vmem:[%s2 + $0x10] sm:$0xf]
        %v381 = vld [vmem:[%s2 + $0x14] sm:$0xf]
        %v382 = vld [vmem:[%s2 + $0x18] sm:$0xf]
        %v383 = vld [vmem:[%s2 + $0x1c] sm:$0xf]
        %v384 = vld [vmem:[%s3] sm:$0xf]
        %v385 = vld [vmem:[%s3 + $0x4] sm:$0xf]
        %v386 = vld [vmem:[%s3 + $0x8] sm:$0xf]
        %v387 = vld [vmem:[%s3 + $0xc] sm:$0xf]
        %v388 = vld [vmem:[%s3 + $0x10] sm:$0xf]
        %v389 = vld [vmem:[%s3 + $0x14] sm:$0xf]
        %v390 = vld [vmem:[%s3 + $0x18] sm:$0xf]
        %v391 = vld [vmem:[%s3 + $0x1c] sm:$0xf]
        %v392 = vld [vmem:[%s3 + $0x20] sm:$0xf]
        %v393 = vld [vmem:[%s3 + $0x24] sm:$0xf]
        %v394 = vld [vmem:[%s3 + $0x28] sm:$0xf]
        %v395 = vld [vmem:[%s3 + $0x2c] sm:$0xf]
        %v396 = vld [vmem:[%s3 + $0x30] sm:$0xf]
        %v397 = vld [vmem:[%s3 + $0x34] sm:$0xf]
        %v398 = vld [vmem:[%s3 + $0x38] sm:$0xf]
        %v399 = vld [vmem:[%s3 + $0x3c] sm:$0xf]
        %v400 = vld [vmem:[%s4] sm:$0xf]
        %v401 = vld [vmem:[%s4 + $0x4] sm:$0xf]
        %v402 = vld [vmem:[%s4 + $0x8] sm:$0xf]
        %v403 = vld [vmem:[%s4 + $0xc] sm:$0xf]
        %v404 = vld [vmem:[%s4 + $0x10] sm:$0xf]
        %v405 = vld [vmem:[%s4 + $0x14] sm:$0xf]
        %v406 = vld [vmem:[%s4 + $0x18] sm:$0xf]
        %v407 = vld [vmem:[%s4 + $0x1c] sm:$0xf]
        %v408 = vld [vmem:[%s4 + $0x20] sm:$0xf]
        %v409 = vld [vmem:[%s4 + $0x24] sm:$0xf]
        %v410 = vld [vmem:[%s4 + $0x28] sm:$0xf]
        %v411 = vld [vmem:[%s4 + $0x2c] sm:$0xf]
        %v412 = vld [vmem:[%s4 + $0x30] sm:$0xf]
        %v413 = vld [vmem:[%s4 + $0x34] sm:$0xf]
        %v414 = vld [vmem:[%s4 + $0x38] sm:$0xf]
        %v415 = vld [vmem:[%s4 + $0x3c] sm:$0xf]
        %v416 = vpack.c.bf16 %v349, %v346
        %v417 = vpack.c.bf16 %v357, %v354
        %v418 = vpack.c.bf16 %v365, %v362
        %v419 = vpack.c.bf16 %v373, %v370
        %v428 = vunpack.c.l.b16 %v376
        %v429 = vunpack.c.l.b16 %v377
        %v430 = vunpack.c.l.b16 %v378
        %v431 = vunpack.c.l.b16 %v379
        %v432 = vunpack.c.l.b16 %v380
        %v433 = vunpack.c.l.b16 %v381
        %v434 = vunpack.c.l.b16 %v382
        %v435 = vunpack.c.l.b16 %v383
        %v436 = vpack.c.b16 %v429, %v428
        %v437 = vpack.c.b16 %v431, %v430
        %v438 = vpack.c.b16 %v433, %v432
        %v439 = vpack.c.b16 %v435, %v434
        %vm444 = vcmask 523264
        %v446 = vsel %vm444, %v416, 0
        %v449 = vsel %vm444, %v417, 0
        %v452 = vsel %vm444, %v418, 0
        %v455 = vsel %vm444, %v419, 0
        %457 = vmatprep.subr.bf16.mxu0 0
        %458 = vmatpush1.bf16.msra.mxu0 %v436
        %459 = vmatprep.subr.bf16.mxu0 0
        %460 = vmatpush1.bf16.msra.mxu0 %v437
        %461 = vmatprep.subr.bf16.mxu0 0
        %462 = vmatpush1.bf16.msra.mxu0 %v438
        %463 = vmatprep.subr.bf16.mxu0 0
        %464 = vmatpush1.bf16.msra.mxu0 %v439
        %465 = vmatprep.subr.bf16.mxu0 0
        %466 = vmatpush1.bf16.msra.mxu0 0
        %467 = vmatprep.subr.bf16.mxu0 0
        %468 = vmatpush1.bf16.msra.mxu0 0
        %469 = vmatprep.subr.bf16.mxu0 0
        %470 = vmatpush1.bf16.msra.mxu0 0
        %471 = vmatprep.subr.bf16.mxu0 0
        %472 = vmatpush1.bf16.msra.mxu0 0
        %473 = vmatprep.subr.bf16.mxu0 0
        %474 = vmatpush1.bf16.msra.mxu0 0
        %475 = vmatprep.subr.bf16.mxu0 0
        %476 = vmatpush1.bf16.msra.mxu0 0
        %477 = vmatprep.subr.bf16.mxu0 0
        %478 = vmatpush1.bf16.msra.mxu0 0
        %479 = vmatprep.subr.bf16.mxu0 0
        %480 = vmatpush1.bf16.msra.mxu0 0
        %481 = vmatprep.subr.bf16.mxu0 0
        %482 = vmatpush1.bf16.msra.mxu0 0
        %483 = vmatprep.subr.bf16.mxu0 0
        %484 = vmatpush1.bf16.msra.mxu0 0
        %485 = vmatprep.subr.bf16.mxu0 0
        %486 = vmatpush1.bf16.msra.mxu0 0
        %487 = vmatprep.subr.bf16.mxu0 0
        %488 = vmatpush1.bf16.msra.mxu0 0
        %489 = vmatprep.mubr.bf16.mxu0 0
        %490 = vmatmul.mubr.bf16.gmra.mrb[0].mxu0 %v446
        %v491 = vpop.f32.mrb[0].mxu0
        %v492 = vadd.f32 0.0, %v491
        %v493 = vpop.f32.mrb[0].mxu0
        %v494 = vpop.f32.mrb[0].mxu0
        %v495 = vadd.f32 0.0, %v494
        %v496 = vpop.f32.mrb[0].mxu0
        %497 = vmatprep.mubr.bf16.mxu0 0
        %498 = vmatmul.mubr.bf16.gmra.mrb[0].mxu0 %v449
        %v499 = vpop.f32.mrb[0].mxu0
        %v500 = vadd.f32 0.0, %v499
        %v501 = vpop.f32.mrb[0].mxu0
        %v502 = vpop.f32.mrb[0].mxu0
        %v503 = vadd.f32 0.0, %v502
        %v504 = vpop.f32.mrb[0].mxu0
        %505 = vmatprep.mubr.bf16.mxu0 0
        %506 = vmatmul.mubr.bf16.gmra.mrb[0].mxu0 %v452
        %v507 = vpop.f32.mrb[0].mxu0
        %v508 = vadd.f32 0.0, %v507
        %v509 = vpop.f32.mrb[0].mxu0
        %v510 = vpop.f32.mrb[0].mxu0
        %v511 = vadd.f32 0.0, %v510
        %v512 = vpop.f32.mrb[0].mxu0
        %513 = vmatprep.mubr.bf16.mxu0 0
        %514 = vmatmul.mubr.bf16.gmra.mrb[0].mxu0 %v455
        %v515 = vpop.f32.mrb[0].mxu0
        %v516 = vadd.f32 0.0, %v515
        %v517 = vpop.f32.mrb[0].mxu0
        %v518 = vpop.f32.mrb[0].mxu0
        %v519 = vadd.f32 0.0, %v518
        %v520 = vpop.f32.mrb[0].mxu0
        %521 = vdwg.mxu0
        %v522 = vpack.c.bf16 %v495, %v492
        %v523 = vpack.c.bf16 %v503, %v500
        %v524 = vpack.c.bf16 %v511, %v508
        %v525 = vpack.c.bf16 %v519, %v516
        %v542 = vunpack.c.l.b16 %v384
        %v543 = vunpack.c.l.b16 %v385
        %v544 = vunpack.c.l.b16 %v386
        %v545 = vunpack.c.l.b16 %v387
        %v546 = vunpack.c.l.b16 %v388
        %v547 = vunpack.c.l.b16 %v389
        %v548 = vunpack.c.l.b16 %v390
        %v549 = vunpack.c.l.b16 %v391
        %v550 = vunpack.c.l.b16 %v392
        %v551 = vunpack.c.l.b16 %v393
        %v552 = vunpack.c.l.b16 %v394
        %v553 = vunpack.c.l.b16 %v395
        %v554 = vunpack.c.l.b16 %v396
        %v555 = vunpack.c.l.b16 %v397
        %v556 = vunpack.c.l.b16 %v398
        %v557 = vunpack.c.l.b16 %v399
        %v558 = vpack.c.b16 %v543, %v542
        %v559 = vpack.c.b16 %v545, %v544
        %v560 = vpack.c.b16 %v547, %v546
        %v561 = vpack.c.b16 %v549, %v548
        %v562 = vpack.c.b16 %v551, %v550
        %v563 = vpack.c.b16 %v553, %v552
        %v564 = vpack.c.b16 %v555, %v554
        %v565 = vpack.c.b16 %v557, %v556
        %574 = vmatprep.subr.bf16.mxu0 0
        %575 = vmatpush1.bf16.msra.mxu0 %v558
        %576 = vmatprep.subr.bf16.mxu0 0
        %577 = vmatpush1.bf16.msra.mxu0 %v559
        %578 = vmatprep.subr.bf16.mxu0 0
        %579 = vmatpush1.bf16.msra.mxu0 %v560
        %580 = vmatprep.subr.bf16.mxu0 0
        %581 = vmatpush1.bf16.msra.mxu0 %v561
        %582 = vmatprep.subr.bf16.mxu0 0
        %583 = vmatpush1.bf16.msra.mxu0 %v562
        %584 = vmatprep.subr.bf16.mxu0 0
        %585 = vmatpush1.bf16.msra.mxu0 %v563
        %586 = vmatprep.subr.bf16.mxu0 0
        %587 = vmatpush1.bf16.msra.mxu0 %v564
        %588 = vmatprep.subr.bf16.mxu0 0
        %589 = vmatpush1.bf16.msra.mxu0 %v565
        %590 = vmatprep.subr.bf16.mxu0 0
        %591 = vmatpush1.bf16.msra.mxu0 0
        %592 = vmatprep.subr.bf16.mxu0 0
        %593 = vmatpush1.bf16.msra.mxu0 0
        %594 = vmatprep.subr.bf16.mxu0 0
        %595 = vmatpush1.bf16.msra.mxu0 0
        %596 = vmatprep.subr.bf16.mxu0 0
        %597 = vmatpush1.bf16.msra.mxu0 0
        %598 = vmatprep.subr.bf16.mxu0 0
        %599 = vmatpush1.bf16.msra.mxu0 0
        %600 = vmatprep.subr.bf16.mxu0 0
        %601 = vmatpush1.bf16.msra.mxu0 0
        %602 = vmatprep.subr.bf16.mxu0 0
        %603 = vmatpush1.bf16.msra.mxu0 0
        %604 = vmatprep.subr.bf16.mxu0 0
        %605 = vmatpush1.bf16.msra.mxu0 0
        %606 = vmatprep.mubr.bf16.mxu0 0
        %607 = vmatmul.mubr.bf16.gmra.mrb[0].mxu0 %v522
        %v608 = vpop.f32.mrb[0].mxu0
        %v609 = vadd.f32 0.0, %v608
        %v610 = vpop.f32.mrb[0].mxu0
        %v611 = vpop.f32.mrb[0].mxu0
        %v612 = vadd.f32 0.0, %v611
        %v613 = vpop.f32.mrb[0].mxu0
        %614 = vmatprep.mubr.bf16.mxu0 0
        %615 = vmatmul.mubr.bf16.gmra.mrb[0].mxu0 %v523
        %v616 = vpop.f32.mrb[0].mxu0
        %v617 = vadd.f32 0.0, %v616
        %v618 = vpop.f32.mrb[0].mxu0
        %v619 = vpop.f32.mrb[0].mxu0
        %v620 = vadd.f32 0.0, %v619
        %v621 = vpop.f32.mrb[0].mxu0
        %622 = vmatprep.mubr.bf16.mxu0 0
        %623 = vmatmul.mubr.bf16.gmra.mrb[0].mxu0 %v524
        %v624 = vpop.f32.mrb[0].mxu0
        %v625 = vadd.f32 0.0, %v624
        %v626 = vpop.f32.mrb[0].mxu0
        %v627 = vpop.f32.mrb[0].mxu0
        %v628 = vadd.f32 0.0, %v627
        %v629 = vpop.f32.mrb[0].mxu0
        %630 = vmatprep.mubr.bf16.mxu0 0
        %631 = vmatmul.mubr.bf16.gmra.mrb[0].mxu0 %v525
        %v632 = vpop.f32.mrb[0].mxu0
        %v633 = vadd.f32 0.0, %v632
        %v634 = vpop.f32.mrb[0].mxu0
        %v635 = vpop.f32.mrb[0].mxu0
        %v636 = vadd.f32 0.0, %v635
        %v637 = vpop.f32.mrb[0].mxu0
        %638 = vdwg.mxu0
        %v639 = vsub.f32 %v346, %v609
        %v640 = vsub.f32 %v349, %v612
        %v641 = vsub.f32 %v354, %v617
        %v642 = vsub.f32 %v357, %v620
        %v643 = vsub.f32 %v362, %v625
        %v644 = vsub.f32 %v365, %v628
        %v645 = vsub.f32 %v370, %v633
        %v646 = vsub.f32 %v373, %v636
        %v647 = vmul.f32 %v639, %v639
        %v648 = vmul.f32 %v640, %v640
        %v649 = vmul.f32 %v641, %v641
        %v650 = vmul.f32 %v642, %v642
        %v651 = vmul.f32 %v643, %v643
        %v652 = vmul.f32 %v644, %v644
        %v653 = vmul.f32 %v645, %v645
        %v654 = vmul.f32 %v646, %v646
        %v655 = vpack.c.bf16 %v648, %v647
        %v656 = vpack.c.bf16 %v650, %v649
        %v657 = vpack.c.bf16 %v652, %v651
        %v658 = vpack.c.bf16 %v654, %v653
        %v660 = vsel %vm444, %v655, 0
        %v663 = vsel %vm444, %v656, 0
        %v666 = vsel %vm444, %v657, 0
        %v669 = vsel %vm444, %v658, 0
        %671 = vmatprep.subr.bf16.mxu0 0
        %672 = vmatpush1.bf16.msra.mxu0 %v436
        %673 = vmatprep.subr.bf16.mxu0 0
        %674 = vmatpush1.bf16.msra.mxu0 %v437
        %675 = vmatprep.subr.bf16.mxu0 0
        %676 = vmatpush1.bf16.msra.mxu0 %v438
        %677 = vmatprep.subr.bf16.mxu0 0
        %678 = vmatpush1.bf16.msra.mxu0 %v439
        %679 = vmatprep.subr.bf16.mxu0 0
        %680 = vmatpush1.bf16.msra.mxu0 0
        %681 = vmatprep.subr.bf16.mxu0 0
        %682 = vmatpush1.bf16.msra.mxu0 0
        %683 = vmatprep.subr.bf16.mxu0 0
        %684 = vmatpush1.bf16.msra.mxu0 0
        %685 = vmatprep.subr.bf16.mxu0 0
        %686 = vmatpush1.bf16.msra.mxu0 0
        %687 = vmatprep.subr.bf16.mxu0 0
        %688 = vmatpush1.bf16.msra.mxu0 0
        %689 = vmatprep.subr.bf16.mxu0 0
        %690 = vmatpush1.bf16.msra.mxu0 0
        %691 = vmatprep.subr.bf16.mxu0 0
        %692 = vmatpush1.bf16.msra.mxu0 0
        %693 = vmatprep.subr.bf16.mxu0 0
        %694 = vmatpush1.bf16.msra.mxu0 0
        %695 = vmatprep.subr.bf16.mxu0 0
        %696 = vmatpush1.bf16.msra.mxu0 0
        %697 = vmatprep.subr.bf16.mxu0 0
        %698 = vmatpush1.bf16.msra.mxu0 0
        %699 = vmatprep.subr.bf16.mxu0 0
        %700 = vmatpush1.bf16.msra.mxu0 0
        %701 = vmatprep.subr.bf16.mxu0 0
        %702 = vmatpush1.bf16.msra.mxu0 0
        %703 = vmatprep.mubr.bf16.mxu0 0
        %704 = vmatmul.mubr.bf16.gmra.mrb[0].mxu0 %v660
        %v705 = vpop.f32.mrb[0].mxu0
        %v706 = vadd.f32 1e-05, %v705
        %v707 = vpop.f32.mrb[0].mxu0
        %v708 = vpop.f32.mrb[0].mxu0
        %v709 = vadd.f32 1e-05, %v708
        %v710 = vpop.f32.mrb[0].mxu0
        %711 = vmatprep.mubr.bf16.mxu0 0
        %712 = vmatmul.mubr.bf16.gmra.mrb[0].mxu0 %v663
        %v713 = vpop.f32.mrb[0].mxu0
        %v714 = vadd.f32 1e-05, %v713
        %v715 = vpop.f32.mrb[0].mxu0
        %v716 = vpop.f32.mrb[0].mxu0
        %v717 = vadd.f32 1e-05, %v716
        %v718 = vpop.f32.mrb[0].mxu0
        %719 = vmatprep.mubr.bf16.mxu0 0
        %720 = vmatmul.mubr.bf16.gmra.mrb[0].mxu0 %v666
        %v721 = vpop.f32.mrb[0].mxu0
        %v722 = vadd.f32 1e-05, %v721
        %v723 = vpop.f32.mrb[0].mxu0
        %v724 = vpop.f32.mrb[0].mxu0
        %v725 = vadd.f32 1e-05, %v724
        %v726 = vpop.f32.mrb[0].mxu0
        %727 = vmatprep.mubr.bf16.mxu0 0
        %728 = vmatmul.mubr.bf16.gmra.mrb[0].mxu0 %v669
        %v729 = vpop.f32.mrb[0].mxu0
        %v730 = vadd.f32 1e-05, %v729
        %v731 = vpop.f32.mrb[0].mxu0
        %v732 = vpop.f32.mrb[0].mxu0
        %v733 = vadd.f32 1e-05, %v732
        %v734 = vpop.f32.mrb[0].mxu0
        %735 = vdwg.mxu0
        %v736 = vrsqrt.pop %v706
        %v737 = vrsqrt.pop %v709
        %v738 = vrsqrt.pop %v714
        %v739 = vrsqrt.pop %v717
        %v740 = vrsqrt.pop %v722
        %v741 = vrsqrt.pop %v725
        %v742 = vrsqrt.pop %v730
        %v743 = vrsqrt.pop %v733
        %v744 = vpack.c.bf16 %v737, %v736
        %v745 = vpack.c.bf16 %v739, %v738
        %v746 = vpack.c.bf16 %v741, %v740
        %v747 = vpack.c.bf16 %v743, %v742
        %v764 = vunpack.c.l.b16 %v400
        %v765 = vunpack.c.l.b16 %v401
        %v766 = vunpack.c.l.b16 %v402
        %v767 = vunpack.c.l.b16 %v403
        %v768 = vunpack.c.l.b16 %v404
        %v769 = vunpack.c.l.b16 %v405
        %v770 = vunpack.c.l.b16 %v406
        %v771 = vunpack.c.l.b16 %v407
        %v772 = vunpack.c.l.b16 %v408
        %v773 = vunpack.c.l.b16 %v409
        %v774 = vunpack.c.l.b16 %v410
        %v775 = vunpack.c.l.b16 %v411
        %v776 = vunpack.c.l.b16 %v412
        %v777 = vunpack.c.l.b16 %v413
        %v778 = vunpack.c.l.b16 %v414
        %v779 = vunpack.c.l.b16 %v415
        %v780 = vpack.c.b16 %v765, %v764
        %v781 = vpack.c.b16 %v767, %v766
        %v782 = vpack.c.b16 %v769, %v768
        %v783 = vpack.c.b16 %v771, %v770
        %v784 = vpack.c.b16 %v773, %v772
        %v785 = vpack.c.b16 %v775, %v774
        %v786 = vpack.c.b16 %v777, %v776
        %v787 = vpack.c.b16 %v779, %v778
        %796 = vmatprep.subr.bf16.mxu0 0
        %797 = vmatpush1.bf16.msra.mxu0 %v780
        %798 = vmatprep.subr.bf16.mxu0 0
        %799 = vmatpush1.bf16.msra.mxu0 %v781
        %800 = vmatprep.subr.bf16.mxu0 0
        %801 = vmatpush1.bf16.msra.mxu0 %v782
        %802 = vmatprep.subr.bf16.mxu0 0
        %803 = vmatpush1.bf16.msra.mxu0 %v783
        %804 = vmatprep.subr.bf16.mxu0 0
        %805 = vmatpush1.bf16.msra.mxu0 %v784
        %806 = vmatprep.subr.bf16.mxu0 0
        %807 = vmatpush1.bf16.msra.mxu0 %v785
        %808 = vmatprep.subr.bf16.mxu0 0
        %809 = vmatpush1.bf16.msra.mxu0 %v786
        %810 = vmatprep.subr.bf16.mxu0 0
        %811 = vmatpush1.bf16.msra.mxu0 %v787
        %812 = vmatprep.subr.bf16.mxu0 0
        %813 = vmatpush1.bf16.msra.mxu0 0
        %814 = vmatprep.subr.bf16.mxu0 0
        %815 = vmatpush1.bf16.msra.mxu0 0
        %816 = vmatprep.subr.bf16.mxu0 0
        %817 = vmatpush1.bf16.msra.mxu0 0
        %818 = vmatprep.subr.bf16.mxu0 0
        %819 = vmatpush1.bf16.msra.mxu0 0
        %820 = vmatprep.subr.bf16.mxu0 0
        %821 = vmatpush1.bf16.msra.mxu0 0
        %822 = vmatprep.subr.bf16.mxu0 0
        %823 = vmatpush1.bf16.msra.mxu0 0
        %824 = vmatprep.subr.bf16.mxu0 0
        %825 = vmatpush1.bf16.msra.mxu0 0
        %826 = vmatprep.subr.bf16.mxu0 0
        %827 = vmatpush1.bf16.msra.mxu0 0
        %828 = vmatprep.mubr.bf16.mxu0 0
        %829 = vmatmul.mubr.bf16.gmra.mrb[0].mxu0 %v744
        %v830 = vpop.f32.mrb[0].mxu0
        %v831 = vadd.f32 0.0, %v830
        %v832 = vpop.f32.mrb[0].mxu0
        %v833 = vpop.f32.mrb[0].mxu0
        %v834 = vadd.f32 0.0, %v833
        %v835 = vpop.f32.mrb[0].mxu0
        %836 = vmatprep.mubr.bf16.mxu0 0
        %837 = vmatmul.mubr.bf16.gmra.mrb[0].mxu0 %v745
        %v838 = vpop.f32.mrb[0].mxu0
        %v839 = vadd.f32 0.0, %v838
        %v840 = vpop.f32.mrb[0].mxu0
        %v841 = vpop.f32.mrb[0].mxu0
        %v842 = vadd.f32 0.0, %v841
        %v843 = vpop.f32.mrb[0].mxu0
        %844 = vmatprep.mubr.bf16.mxu0 0
        %845 = vmatmul.mubr.bf16.gmra.mrb[0].mxu0 %v746
        %v846 = vpop.f32.mrb[0].mxu0
        %v847 = vadd.f32 0.0, %v846
        %v848 = vpop.f32.mrb[0].mxu0
        %v849 = vpop.f32.mrb[0].mxu0
        %v850 = vadd.f32 0.0, %v849
        %v851 = vpop.f32.mrb[0].mxu0
        %852 = vmatprep.mubr.bf16.mxu0 0
        %853 = vmatmul.mubr.bf16.gmra.mrb[0].mxu0 %v747
        %v854 = vpop.f32.mrb[0].mxu0
        %v855 = vadd.f32 0.0, %v854
        %v856 = vpop.f32.mrb[0].mxu0
        %v857 = vpop.f32.mrb[0].mxu0
        %v858 = vadd.f32 0.0, %v857
        %v859 = vpop.f32.mrb[0].mxu0
        %860 = vdwg.mxu0
        %v861 = vmul.f32 %v639, %v831
        %v862 = vmul.f32 %v640, %v834
        %v863 = vmul.f32 %v641, %v839
        %v864 = vmul.f32 %v642, %v842
        %v865 = vmul.f32 %v643, %v847
        %v866 = vmul.f32 %v644, %v850
        %v867 = vmul.f32 %v645, %v855
        %v868 = vmul.f32 %v646, %v858
        %v869 = vld [vmem:[%s5] sm:$0x1]
        %v871 = vlaneseq
        %v872 = vshrl.u32 %v871, 7
        %v873 = vsub.s32 0, %v872
        %v874 = vrot.slane %v869, %v873
        %v876 = vadd.f32 %v861, %v874
        %v877 = vadd.f32 %v862, %v874
        %v878 = vadd.f32 %v863, %v874
        %v879 = vadd.f32 %v864, %v874
        %v880 = vadd.f32 %v865, %v874
        %v881 = vadd.f32 %v866, %v874
        %v882 = vadd.f32 %v867, %v874
        %v883 = vadd.f32 %v868, %v874
        %v884 = vpack.c.bf16 %v876, %v876
        %v885 = vpack.c.bf16 %v877, %v877
        %v886 = vpack.c.bf16 %v878, %v878
        %v887 = vpack.c.bf16 %v879, %v879
        %v888 = vpack.c.bf16 %v880, %v880
        %v889 = vpack.c.bf16 %v881, %v881
        %v890 = vpack.c.bf16 %v882, %v882
        %v891 = vpack.c.bf16 %v883, %v883
        %vm892 = vcmask 257024
        %893 = vst.msk [vmem:[%s245] sm:$0xf] %vm892, %v884
        %894 = vst.msk [vmem:[%s245 + $0x8] sm:$0xf] %vm892, %v885
        %895 = vst.msk [vmem:[%s245 + $0x10] sm:$0xf] %vm892, %v886
        %896 = vst.msk [vmem:[%s245 + $0x18] sm:$0xf] %vm892, %v887
        %897 = vst.msk [vmem:[%s245 + $0x20] sm:$0xf] %vm892, %v888
        %898 = vst.msk [vmem:[%s245 + $0x28] sm:$0xf] %vm892, %v889
        %899 = vst.msk [vmem:[%s245 + $0x30] sm:$0xf] %vm892, %v890
        %900 = vst.msk [vmem:[%s245 + $0x38] sm:$0xf] %vm892, %v891
        %v909 = vunpack.c.l.b16 %v884
        %v910 = vunpack.c.l.b16 %v885
        %v911 = vunpack.c.l.b16 %v886
        %v912 = vunpack.c.l.b16 %v887
        %v913 = vunpack.c.l.b16 %v888
        %v914 = vunpack.c.l.b16 %v889
        %v915 = vunpack.c.l.b16 %v890
        %v916 = vunpack.c.l.b16 %v891
        %v917 = vpack.c.b16 %v909, %v909
        %v918 = vpack.c.b16 %v910, %v910
        %v919 = vpack.c.b16 %v911, %v911
        %v920 = vpack.c.b16 %v912, %v912
        %v921 = vpack.c.b16 %v913, %v913
        %v922 = vpack.c.b16 %v914, %v914
        %v923 = vpack.c.b16 %v915, %v915
        %v924 = vpack.c.b16 %v916, %v916
        %925 = vrot.lane.b32.xlu0 %v917, 96
        %v926 = vpop.permute.xlu0 %925
        %927 = vrot.lane.b32.xlu0 %v918, 96
        %v928 = vpop.permute.xlu0 %927
        %929 = vrot.lane.b32.xlu0 %v919, 96
        %v930 = vpop.permute.xlu0 %929
        %931 = vrot.lane.b32.xlu0 %v920, 96
        %v932 = vpop.permute.xlu0 %931
        %933 = vrot.lane.b32.xlu0 %v921, 96
        %v934 = vpop.permute.xlu0 %933
        %935 = vrot.lane.b32.xlu0 %v922, 96
        %v936 = vpop.permute.xlu0 %935
        %937 = vrot.lane.b32.xlu0 %v923, 96
        %v938 = vpop.permute.xlu0 %937
        %939 = vrot.lane.b32.xlu0 %v924, 96
        %v940 = vpop.permute.xlu0 %939
        %s949 = scalar_lea.vmem %s245, 4 [#allocation2]
        %950 = vst.msk [vmem:[%s949] sm:$0xf] %vm892, %v926
        %951 = vst.msk [vmem:[%s949 + $0x8] sm:$0xf] %vm892, %v928
        %952 = vst.msk [vmem:[%s949 + $0x10] sm:$0xf] %vm892, %v930
        %953 = vst.msk [vmem:[%s949 + $0x18] sm:$0xf] %vm892, %v932
        %954 = vst.msk [vmem:[%s949 + $0x20] sm:$0xf] %vm892, %v934
        %955 = vst.msk [vmem:[%s949 + $0x28] sm:$0xf] %vm892, %v936
        %956 = vst.msk [vmem:[%s949 + $0x30] sm:$0xf] %vm892, %v938
        %957 = vst.msk [vmem:[%s949 + $0x38] sm:$0xf] %vm892, %v940
        %s958 = sand.u32 %s159, 1
        %s959 = scalar_lea.sflag [#allocation3], %s958
        %s960 = sand.u32 %s159, 1
        %s961 = smul.addr %s960, 64
        %s962 = scalar_lea.vmem [#allocation2], %s961
        // Predicated region
        $region45: #{tpu_custom_call.1} parent=43 // pred_check
          %p963 = pneg %p169
        $region46: #{tpu_custom_call.1} parent=43 // pred_check_branch
          %965 = sbr.rel (%p963) target = $region48
        $region47: #{tpu_custom_call.1} parent=43 // pred_region
          %s966 = smul.u32 8, %s20
          %s968 = ssub.s32 1024, 1024
          %969 = vsyncadd %s959, %s968
          %s970 = smul.addr %s966, 2
          %s971 = smul.addr %s970, 64
          %s972 = scalar_lea.hbm %s6, %s971
          %s973 = sshll.u32 %s962, 4
          %s974 = int_to_ptr.vmem [resolvable:$true] %s973
          %979 = dma.vmem_to_hbm [thread:$0]  %s974, 1024, %s972, %s959, 64, 64, 4
        $region48: #{tpu_custom_call.1} parent=43 // pred_fallthru
          _
      $region44: #{tpu_custom_call.1} parent=5 // pred_fallthru
        _
      %p980 = scmp.le.s32.totalorder 2, %s15
      // Predicated region
      $region49: #{tpu_custom_call.1} parent=5 // pred_check
        %p981 = pneg %p980
      $region50: #{tpu_custom_call.1} parent=5 // pred_check_branch
        %983 = sbr.rel (%p981) target = $region52
      $region51: #{tpu_custom_call.1} parent=5 // pred_region
        %s984 = ssub.s32 %s15, 2
        // Predicated region
        $region53: #{tpu_custom_call.1} parent=51 // pred_check
          %p985 = pneg %p175
        $region54: #{tpu_custom_call.1} parent=51 // pred_check_branch
          %987 = sbr.rel (%p985) target = $region56
        $region55: #{tpu_custom_call.1} parent=51 // pred_region
          %s988 = sand.u32 %s160, 1
          %s989 = scalar_lea.sflag [#allocation3], %s988
          %s990 = sand.u32 %s160, 1
          %s991 = smul.addr %s990, 64
          %s992 = scalar_lea.vmem [#allocation2], %s991
          %993 = dma.done %s989, 1024
        $region56: #{tpu_custom_call.1} parent=51 // pred_fallthru
          _
      $region52: #{tpu_custom_call.1} parent=5 // pred_fallthru
        _
    $region6: #{tpu_custom_call.1} parent=1 // loop_footer
      %s19 = sadd.s32 1, %s15
    $region7: #{tpu_custom_call.1} parent=1 // loop_footer_branch
      %14 = sbr.rel target = $region3
    $region8: #{tpu_custom_call.1} parent=1 // loop_exit
      _
    %994 = vsyncpa [#allocation3], 1
    %s995 = scalar_lea.sflag [#allocation3], 1
    %996 = vsyncpa %s995, 1

</llo_original>
